<compile_context>
chip_gen: v6e
topology: v6e:2x2x1
jax: 0.10.0
libtpu: 0.0.40
codegen_flags: <defaults>
</compile_context>

<pallas_src>
import functools

import jax
import jax.numpy as jnp
from jax.experimental import pallas as pl
from jax.experimental.pallas import tpu as pltpu


def _round_up(x, m):
    return (x + m - 1) // m * m


def ff_layer_kernel(x_ref, w_ref, b_ref, o_ref):
    """o = tanh(x @ w + b) for one (tile_m, F) row tile."""
    y = jnp.dot(x_ref[...], w_ref[...], preferred_element_type=jnp.float32)
    y = y + b_ref[...]                       # (tile_m, H) + (1, H) broadcast
    o_ref[...] = jnp.tanh(y).astype(o_ref.dtype)


def _ff_layer(x2d, w_t, b, out_dtype, tile_m):
    """x2d: (M_pad, F) f32, w_t: (F, H) f32, b: (1, H) f32 -> (M_pad, H)."""
    M_pad, F = x2d.shape
    H = w_t.shape[1]
    grid = (M_pad // tile_m,)

    return pl.pallas_call(
        ff_layer_kernel,
        out_shape=jax.ShapeDtypeStruct((M_pad, H), out_dtype),
        grid_spec=pl.GridSpec(
            grid=grid,
            in_specs=[
                pl.BlockSpec((tile_m, F), lambda i: (i, 0)),  # row tile of x
                pl.BlockSpec((F, H), lambda i: (0, 0)),       # W^T (resident)
                pl.BlockSpec((1, H), lambda i: (0, 0)),       # bias (resident)
            ],
            out_specs=pl.BlockSpec((tile_m, H), lambda i: (i, 0)),
        ),
        compiler_params=pltpu.CompilerParams(
            dimension_semantics=("parallel",),                # rows are independent
        ),
    )(x2d, w_t, b)


def ff_forward(features, weights, biases):
    """Equivalent of FF.forward(features).

    features : (batch, n_samples, n_features) or (batch, n_features)
    weights  : list of (H_l, F_l) arrays (PyTorch nn.Linear.weight layout)
    biases   : list of (H_l,) arrays
    """
    orig_dtype = features.dtype
    lead_shape = features.shape[:-1]
    F0 = features.shape[-1]

    # Flatten all leading dims into one row dimension M.
    x = features.reshape(-1, F0).astype(jnp.float32)
    M = x.shape[0]

    # Pad rows to a sublane-friendly tile size; one tile for small M.
    M_pad8 = _round_up(max(M, 1), 8)
    tile_m = M_pad8 if M_pad8 <= 1024 else 512
    M_pad = _round_up(M, tile_m)
    if M_pad != M:
        x = jnp.pad(x, ((0, M_pad - M), (0, 0)))

    out = x
    for w, b in zip(weights, biases):
        H = w.shape[0]
        w_t = jnp.asarray(w, jnp.float32).T          # (F, H): lane-dense, no in-kernel .T
        b2 = jnp.asarray(b, jnp.float32).reshape(1, H)
        out = _ff_layer(out, w_t, b2, jnp.float32, tile_m)

    out = out[:M].astype(orig_dtype)
    return out.reshape(lead_shape + (out.shape[-1],))


def ff_reference(features, weights, biases):
    """Pure-JAX reference matching torch: tanh(linear(...)) chained."""
    out = features.astype(jnp.float32)
    for w, b in zip(weights, biases):
        out = jnp.tanh(out @ jnp.asarray(w, jnp.float32).T + jnp.asarray(b, jnp.float32))
    return out.astype(features.dtype)


if __name__ == "__main__":
    # Module config (defaults of FF.__init__): hidden_size=[16]
    n_features = 24
    hidden_sizes = [16]
    batch_size = 2
    n_samples = 8

    key = jax.random.PRNGKey(0)
    k_x, k_x2, *k_params = jax.random.split(key, 2 + 2 * len(hidden_sizes))

    # Deterministic synthetic parameters (PyTorch nn.Linear init: U(-1/sqrt(fan_in), 1/sqrt(fan_in)))
    weights, biases = [], []
    fan_in = n_features
    for li, h in enumerate(hidden_sizes):
        bound = 1.0 / jnp.sqrt(fan_in)
        kw, kb = k_params[2 * li], k_params[2 * li + 1]
        weights.append(jax.random.uniform(kw, (h, fan_in), jnp.float32, -bound, bound))
        biases.append(jax.random.uniform(kb, (h,), jnp.float32, -bound, bound))
        fan_in = h

    # 3-D input: (batch_size, n_samples, n_features)
    features = jax.random.normal(k_x, (batch_size, n_samples, n_features), jnp.float32)
    out = ff_forward(features, weights, biases)
    out = jax.block_until_ready(out)
    ref = ff_reference(features, weights, biases)
    assert out.shape == (batch_size, n_samples, hidden_sizes[-1])
    assert jnp.max(jnp.abs(out - ref)) < 1e-5, "3-D mismatch vs JAX reference"

    # 2-D input: (batch_size, n_features)  (also supported by FF.forward)
    features2d = jax.random.normal(k_x2, (batch_size, n_features), jnp.float32)
    out2 = ff_forward(features2d, weights, biases)
    out2 = jax.block_until_ready(out2)
    ref2 = ff_reference(features2d, weights, biases)
    assert out2.shape == (batch_size, hidden_sizes[-1])
    assert jnp.max(jnp.abs(out2 - ref2)) < 1e-5, "2-D mismatch vs JAX reference"

    print("KERNEL_OK")
</pallas_src>

<mosaic_0001>
module attributes {stable_mosaic.version = 11 : i64} {
  func.func @ff_layer_kernel(%arg0: i32, %arg1: memref<16x24xf32, #tpu.memory_space<vmem>>, %arg2: memref<24x16xf32, #tpu.memory_space<vmem>>, %arg3: memref<1x16xf32, #tpu.memory_space<vmem>>, %arg4: memref<16x16xf32, #tpu.memory_space<vmem>>) attributes {dimension_semantics = [#tpu.dimension_semantics<parallel>], iteration_bounds = array<i64: 1>, scalar_prefetch = 0 : i64, scratch_operands = 0 : i64, tpu.core_type = #tpu.core_type<tc>, window_params = [{transform_indices = @transform_0, window_bounds = array<i64: 16, 24>}, {pipeline_mode = #tpu.pipeline_mode<synchronous>, transform_indices = @transform_1, window_bounds = array<i64: 24, 16>}, {pipeline_mode = #tpu.pipeline_mode<synchronous>, transform_indices = @transform_2, window_bounds = array<i64: 1, 16>}, {transform_indices = @transform_3, window_bounds = array<i64: 16, 16>}]} {
    %c0 = arith.constant 0 : index
    %c0_0 = arith.constant 0 : index
    %0 = vector.load %arg1[%c0, %c0_0] : memref<16x24xf32, #tpu.memory_space<vmem>>, vector<16x24xf32>
    %c0_1 = arith.constant 0 : index
    %c0_2 = arith.constant 0 : index
    %1 = vector.load %arg2[%c0_1, %c0_2] : memref<24x16xf32, #tpu.memory_space<vmem>>, vector<24x16xf32>
    %cst = arith.constant dense<0.000000e+00> : vector<16x16xf32>
    %2 = tpu.matmul %0, %1, %cst {dimension_numbers = #tpu.dot_dimension_numbers<[1], [0], [0], [1], [0, 0, 1, 1], [], []>} : vector<16x24xf32>, vector<24x16xf32>, vector<16x16xf32> -> vector<16x16xf32>
    %c0_3 = arith.constant 0 : index
    %c0_4 = arith.constant 0 : index
    %3 = vector.load %arg3[%c0_3, %c0_4] : memref<1x16xf32, #tpu.memory_space<vmem>>, vector<1x16xf32>
    %4 = vector.broadcast %3 : vector<1x16xf32> to vector<16x16xf32>
    %5 = arith.addf %2, %4 : vector<16x16xf32>
    %6 = math.tanh %5 : vector<16x16xf32>
    %c0_5 = arith.constant 0 : index
    %c0_6 = arith.constant 0 : index
    %7 = vector.load %arg4[%c0_5, %c0_6] : memref<16x16xf32, #tpu.memory_space<vmem>>, vector<16x16xf32>
    tpu.vector_store %arg4[%c0_5, %c0_6], %6 {strides = array<i32>} : memref<16x16xf32, #tpu.memory_space<vmem>>, vector<16x16xf32>,
    return
  }
  func.func @transform_0(%arg0: i32) -> (i32, i32) {
    %c0_i32 = arith.constant 0 : i32
    %c0_i32_0 = arith.constant 0 : i32
    return %arg0, %c0_i32 : i32, i32
  }
  func.func @transform_1(%arg0: i32) -> (i32, i32) {
    %c0_i32 = arith.constant 0 : i32
    %c0_i32_0 = arith.constant 0 : i32
    %c0_i32_1 = arith.constant 0 : i32
    return %c0_i32, %c0_i32_0 : i32, i32
  }
  func.func @transform_2(%arg0: i32) -> (i32, i32) {
    %c0_i32 = arith.constant 0 : i32
    %c0_i32_0 = arith.constant 0 : i32
    %c0_i32_1 = arith.constant 0 : i32
    return %c0_i32, %c0_i32_0 : i32, i32
  }
  func.func @transform_3(%arg0: i32) -> (i32, i32) {
    %c0_i32 = arith.constant 0 : i32
    %c0_i32_0 = arith.constant 0 : i32
    return %arg0, %c0_i32 : i32, i32
  }
}

</mosaic_0001>

<llo_original>
// kernel: tpu_custom_call.1
$region0: #{tpu_custom_call.1}
  #allocation0 [shape = 'u32[]', space=smem, size = 0x4, offset = 0x4, fixed_abs, tag = 'smem constant byte address 0x4 - core index']
  #allocation1 [shape = 'u32[144,128]{1,0:T(1,128)}', space=vmem, size = 0x12000, scoped, tag = 'internal scratch']
  %s0 = inlined_call_operand.vmem [shape: f32[16,24], index: 0, kind: input, shape index: {}]
  %s1 = inlined_call_operand.vmem [shape: f32[24,16], index: 1, kind: input, shape index: {}]
  %s2 = inlined_call_operand.vmem [shape: f32[1,16], index: 2, kind: input, shape index: {}]
  %s3 = inlined_call_operand.hbm [shape: f32[16,16], index: 3, kind: output, shape index: {}]
  %s4 = sld [smem:[#allocation0]]
  $region22: #{tpu_custom_call.1} parent=0
    _
  %s6 = ssub.s32 1, %s4
  %s7 = scalar_select 0, %s6, %s4
  $region1: #{tpu_custom_call.1} parent=0
    #allocation2 [shape = 'u8[8192]{0}', space=vmem, size = 0x2000, scoped, tag = 'output window, operand 0, single buffered']
    #allocation3 [shape = 's32[1]{0}', space=sflag, size = 0x4, scoped, tag = 'scoped memory for tpu_custom_call.1']
    %8 = vsyncpa [#allocation3], 0
    // Predicated region
    $region2: #{tpu_custom_call.1} parent=1 // pred_check
      _
    $region3: #{tpu_custom_call.1} parent=1 // pred_check_branch
      %10 = sbr.rel (0) target = $region5
    $region4: #{tpu_custom_call.1} parent=1 // pred_region
      _
    $region5: #{tpu_custom_call.1} parent=1 // pred_fallthru
      _
    // Predicated region
    $region6: #{tpu_custom_call.1} parent=1 // pred_check
      _
    $region7: #{tpu_custom_call.1} parent=1 // pred_check_branch
      %12 = sbr.rel (0) target = $region9
    $region8: #{tpu_custom_call.1} parent=1 // pred_region
      _
    $region9: #{tpu_custom_call.1} parent=1 // pred_fallthru
      _
    // Predicated region
    $region10: #{tpu_custom_call.1} parent=1 // pred_check
      _
    $region11: #{tpu_custom_call.1} parent=1 // pred_check_branch
      %14 = sbr.rel (0) target = $region13
    $region12: #{tpu_custom_call.1} parent=1 // pred_region
      _
    $region13: #{tpu_custom_call.1} parent=1 // pred_fallthru
      _
    %v15 = vld [vmem:[%s0] sm:$0xff]
    %v16 = vld [vmem:[%s0 + $0x8] sm:$0xff]
    %v17 = vld [vmem:[%s1] sm:$0xff]
    %v18 = vld [vmem:[%s1 + $0x8] sm:$0xff]
    %v19 = vld [vmem:[%s1 + $0x10] sm:$0xff]
    %v20 = vld [vmem:[%s2] sm:$0x1]
    %v22 = vlaneseq
    %v23 = vshrl.u32 %v22, 7
    %v24 = vsub.s32 0, %v23
    %v25 = vrot.slane %v20, %v24
    %vm27 = vcmask 195584
    %v29 = vsel %vm27, %v15, 0
    %v32 = vsel %vm27, %v16, 0
    %34 = vmatprep.subr.mxu0 0.0
    %35 = vmatpush1.msra.mxu0 0.0
    %36 = vmatprep.subr.mxu0 0.0
    %37 = vmatpush1.msra.mxu0 0.0
    %38 = vmatprep.subr.mxu0 0.0
    %39 = vmatpush1.msra.mxu0 0.0
    %40 = vmatprep.subr.mxu0 0.0
    %41 = vmatpush1.msra.mxu0 0.0
    %42 = vmatprep.subr.mxu0 0.0
    %43 = vmatpush1.msra.mxu0 0.0
    %44 = vmatprep.subr.mxu0 0.0
    %45 = vmatpush1.msra.mxu0 0.0
    %46 = vmatprep.subr.mxu0 0.0
    %47 = vmatpush1.msra.mxu0 0.0
    %48 = vmatprep.subr.mxu0 0.0
    %49 = vmatpush1.msra.mxu0 0.0
    %50 = vmatprep.subr.mxu0 0.0
    %51 = vmatpush1.msra.mxu0 0.0
    %52 = vmatprep.subr.mxu0 0.0
    %53 = vmatpush1.msra.mxu0 0.0
    %54 = vmatprep.subr.mxu0 0.0
    %55 = vmatpush1.msra.mxu0 0.0
    %56 = vmatprep.subr.mxu0 0.0
    %57 = vmatpush1.msra.mxu0 0.0
    %58 = vmatprep.subr.mxu0 0.0
    %59 = vmatpush1.msra.mxu0 0.0
    %60 = vmatprep.subr.mxu0 0.0
    %61 = vmatpush1.msra.mxu0 %v19
    %62 = vmatprep.subr.mxu0 0.0
    %63 = vmatpush1.msra.mxu0 %v18
    %64 = vmatprep.subr.mxu0 0.0
    %65 = vmatpush1.msra.mxu0 %v17
    %66 = vmatprep.subr.mxu0 0.0
    %67 = vmatpush2.msra.mxu0 0.0
    %68 = vmatprep.subr.mxu0 0.0
    %69 = vmatpush2.msra.mxu0 0.0
    %70 = vmatprep.subr.mxu0 0.0
    %71 = vmatpush2.msra.mxu0 0.0
    %72 = vmatprep.subr.mxu0 0.0
    %73 = vmatpush2.msra.mxu0 0.0
    %74 = vmatprep.subr.mxu0 0.0
    %75 = vmatpush2.msra.mxu0 0.0
    %76 = vmatprep.subr.mxu0 0.0
    %77 = vmatpush2.msra.mxu0 0.0
    %78 = vmatprep.subr.mxu0 0.0
    %79 = vmatpush2.msra.mxu0 0.0
    %80 = vmatprep.subr.mxu0 0.0
    %81 = vmatpush2.msra.mxu0 0.0
    %82 = vmatprep.subr.mxu0 0.0
    %83 = vmatpush2.msra.mxu0 0.0
    %84 = vmatprep.subr.mxu0 0.0
    %85 = vmatpush2.msra.mxu0 0.0
    %86 = vmatprep.subr.mxu0 0.0
    %87 = vmatpush2.msra.mxu0 0.0
    %88 = vmatprep.subr.mxu0 0.0
    %89 = vmatpush2.msra.mxu0 0.0
    %90 = vmatprep.subr.mxu0 0.0
    %91 = vmatpush2.msra.mxu0 0.0
    %92 = vmatprep.subr.mxu0 0.0
    %93 = vmatpush2.msra.mxu0 0.0
    %94 = vmatprep.subr.mxu0 0.0
    %95 = vmatpush2.msra.mxu0 0.0
    %96 = vmatprep.subr.mxu0 0.0
    %97 = vmatpush2.msra.mxu0 0.0
    %98 = vmatprep.mubr.f32.mxu0 0.0
    %99 = vmatmul.mubr.f32.gmra.mxu0 %v29
    %v100 = vpop.f32.mrf.mxu0
    %v101 = vadd.f32 %v25, %v100
    %v102 = vpop.f32.mrf.mxu0
    %103 = vmatprep.mubr.f32.mxu0 0.0
    %104 = vmatmul.mubr.f32.gmra.mxu0 %v32
    %v105 = vpop.f32.mrf.mxu0
    %v106 = vadd.f32 %v25, %v105
    %v107 = vpop.f32.mrf.mxu0
    %108 = vdwg.mxu0
    %v109 = vtanh.pop %v101
    %v110 = vtanh.pop %v106
    %vm111 = vcmask 130048
    %112 = vst.msk [vmem:[#allocation2] sm:$0xff] %vm111, %v109
    %113 = vst.msk [vmem:[#allocation2 + $0x8] sm:$0xff] %vm111, %v110
    // Predicated region
    $region14: #{tpu_custom_call.1} parent=1 // pred_check
      _
    $region15: #{tpu_custom_call.1} parent=1 // pred_check_branch
      %115 = sbr.rel (0) target = $region17
    $region16: #{tpu_custom_call.1} parent=1 // pred_region
      %s117 = ssub.s32 256, 256
      %118 = vsyncadd [#allocation3], %s117
      %s119 = sshll.u32 [#allocation2], 4
      %s120 = int_to_ptr.vmem [resolvable:$true] %s119
      %125 = dma.vmem_to_hbm [thread:$0]  %s120, 256, %s3, [#allocation3], 128, 128, 8
    $region17: #{tpu_custom_call.1} parent=1 // pred_fallthru
      _
    // Predicated region
    $region18: #{tpu_custom_call.1} parent=1 // pred_check
      _
    $region19: #{tpu_custom_call.1} parent=1 // pred_check_branch
      %127 = sbr.rel (0) target = $region21
    $region20: #{tpu_custom_call.1} parent=1 // pred_region
      %128 = dma.done [#allocation3], 256
    $region21: #{tpu_custom_call.1} parent=1 // pred_fallthru
      _
    %129 = vsyncpa [#allocation3], 1

</llo_original>
